<compile_context>
chip_gen: v6e
topology: v6e:2x2x1
jax: 0.10.0
libtpu: 0.0.40
codegen_flags: <defaults>
</compile_context>

<pallas_src>
import functools

import jax
import jax.numpy as jnp
from jax.experimental import pallas as pl
from jax.experimental.pallas import tpu as pltpu


# ----------------------------------------------------------------------------
# Fused kernel: one grid step = one batch sample, everything VMEM-resident.
#   x_ref   : (Cin,  M)        bf16 input sample (channels x flattened spatial)
#   w1_ref  : (Cmid, Cin)      bf16, conv1 weight with BN1 scale folded in
#   s1_ref  : (Cmid, 1)        f32 BN1 shift
#   w2_ref  : (Cmid, 27*Cmid)  bf16, conv2 weight per tap (BN2 scale folded)
#   s2_ref  : (Cmid, 1)        f32 BN2 shift
#   w3_ref  : (Cout, Cmid)     bf16, conv3 weight with BN3 scale folded in
#   s3_ref  : (Cout, 1)        f32 BN3 shift
#   mask_ref: (27, M)          bf16 0/1 tap-validity masks (lane-dense)
#   o_ref   : (Cout, M)        f32 output
# ----------------------------------------------------------------------------
def _bottleneck3d_kernel(x_ref, w1_ref, s1_ref, w2_ref, s2_ref, w3_ref, s3_ref,
                         mask_ref, o_ref, *, taps):
    x = x_ref[...]                                   # (Cin, M) bf16
    m = x.shape[-1]

    # conv1 (1x1x1) + BN1 + ReLU -> (Cmid, M) f32
    t1 = jnp.dot(w1_ref[...], x, preferred_element_type=jnp.float32)
    t1 = jnp.maximum(t1 + s1_ref[...], 0.0)

    # conv2 (3x3x3, padding=1, stride=1) + BN2 + ReLU as ONE stacked matmul.
    # Each tap = constant lane rotation of the flattened (d,h,w) axis + a 0/1
    # validity mask (any wrapped read corresponds to an out-of-bounds neighbour
    # and is zeroed, matching zero padding). The 27 masked copies are stacked
    # along the contraction axis so the MXU sees a single K = 27*Cmid matmul.
    masks = mask_ref[...].astype(jnp.float32)        # (27, M); 0/1 -> exact
    rows = [pltpu.roll(t1, shift=(-off) % m, axis=1) * masks[t:t + 1, :]
            for t, off in enumerate(taps)]
    stacked = jnp.concatenate(rows, axis=0).astype(jnp.bfloat16)  # (27*Cmid, M)

    t2 = jnp.dot(w2_ref[...], stacked, preferred_element_type=jnp.float32)
    t2 = jnp.maximum(t2 + s2_ref[...], 0.0).astype(jnp.bfloat16)

    # conv3 (1x1x1) + BN3, residual add (re-read x from VMEM), final ReLU.
    t3 = jnp.dot(w3_ref[...], t2, preferred_element_type=jnp.float32) + s3_ref[...]
    o_ref[...] = jnp.maximum(t3 + x_ref[...].astype(jnp.float32), 0.0)


# ----------------------------------------------------------------------------
# One-time preparation: fold BatchNorm into conv weights, build tap offsets and
# lane-dense validity masks for the 3x3x3 conv.  Done once, outside the hot path.
# ----------------------------------------------------------------------------
def _fold_bn(gamma, beta, mean, var, eps):
    scale = gamma / jnp.sqrt(var + eps)
    shift = beta - mean * scale
    return scale, shift


def prepare_bottleneck(params, D, H, W, eps=1e-5, compute_dtype=jnp.bfloat16):
    s1, sh1 = _fold_bn(params["g1"], params["be1"], params["m1"], params["v1"], eps)
    s2, sh2 = _fold_bn(params["g2"], params["be2"], params["m2"], params["v2"], eps)
    s3, sh3 = _fold_bn(params["g3"], params["be3"], params["m3"], params["v3"], eps)

    w1f = (params["w1"][:, :, 0, 0, 0] * s1[:, None]).astype(compute_dtype)  # (Cmid, Cin)
    w3f = (params["w3"][:, :, 0, 0, 0] * s3[:, None]).astype(compute_dtype)  # (Cout, Cmid)

    dhw = D * H * W
    idx = jnp.arange(dhw, dtype=jnp.int32)
    dc = idx // (H * W)
    hc = (idx // W) % H
    wc = idx % W

    taps, w2_cols, mask_rows = [], [], []
    w2 = params["w2"]                                           # (Cmid,Cmid,3,3,3)
    for kd in range(3):
        for kh in range(3):
            for kw in range(3):
                dd, dh, dw = kd - 1, kh - 1, kw - 1
                taps.append(dd * H * W + dh * W + dw)
                w2_cols.append(w2[:, :, kd, kh, kw] * s2[:, None])
                valid = ((dc + dd >= 0) & (dc + dd < D) &
                         (hc + dh >= 0) & (hc + dh < H) &
                         (wc + dw >= 0) & (wc + dw < W))
                mask_rows.append(valid.astype(jnp.float32))

    return {
        "w1f": w1f, "sh1": sh1[:, None].astype(jnp.float32),
        "w2f": jnp.concatenate(w2_cols, axis=1).astype(compute_dtype),  # (Cmid, 27*Cmid)
        "sh2": sh2[:, None].astype(jnp.float32),
        "w3f": w3f, "sh3": sh3[:, None].astype(jnp.float32),
        "masks": jnp.stack(mask_rows).astype(compute_dtype),            # (27, dhw)
        "taps": tuple(int(t) for t in taps),
        "D": D, "H": H, "W": W, "dhw": dhw,
    }


# ----------------------------------------------------------------------------
# Forward: single pallas_call, grid over batch (parallel).
# x: (B, Cin, D, H, W) f32  ->  (B, Cout, D, H, W) f32
# ----------------------------------------------------------------------------
def bottleneck3d_forward(prep, x):
    B, Cin, D, H, W = x.shape
    assert (D, H, W) == (prep["D"], prep["H"], prep["W"])
    dhw = prep["dhw"]
    cmid = prep["w1f"].shape[0]
    cout = prep["w3f"].shape[0]
    assert cout == Cin, "identity residual requires in_channels == out_channels*4"

    # Free reshape only (no transposes). Activations go through the MXU in bf16;
    # in a full network they would already arrive in bf16.
    xk = x.reshape(B, Cin, dhw).astype(prep["w1f"].dtype)

    # Cost / VMEM budget (per grid step, double-buffered blocks + intermediates).
    flops = 2 * B * dhw * (cmid * Cin + 27 * cmid * cmid + cout * cmid)
    const_bytes = (prep["w1f"].size + prep["w2f"].size + prep["w3f"].size +
                   prep["masks"].size) * 2 + (cmid + cmid + cout) * 4
    bytes_accessed = 2 * B * Cin * dhw + 4 * B * cout * dhw + const_bytes
    cost = pl.CostEstimate(flops=int(flops), transcendentals=0,
                           bytes_accessed=int(bytes_accessed))

    inter_bytes = (cmid * dhw * 4                # t1 (f32)
                   + 27 * cmid * dhw * (4 + 2)   # stacked staging f32 + bf16
                   + cmid * dhw * 4              # t2
                   + 2 * cout * dhw * 4)         # t3 / epilogue
    working = 2 * (Cin * dhw * 2 + cout * dhw * 4 + const_bytes) + inter_bytes
    vmem_limit = int(min(max(2 * working, 32 * 1024 * 1024), 48 * 1024 * 1024))

    out = pl.pallas_call(
        functools.partial(_bottleneck3d_kernel, taps=prep["taps"]),
        out_shape=jax.ShapeDtypeStruct((B, cout, dhw), jnp.float32),
        grid=(B,),
        in_specs=[
            pl.BlockSpec((None, Cin, dhw), lambda b: (b, 0, 0)),   # x (squeezed batch)
            pl.BlockSpec(prep["w1f"].shape, lambda b: (0, 0)),
            pl.BlockSpec(prep["sh1"].shape, lambda b: (0, 0)),
            pl.BlockSpec(prep["w2f"].shape, lambda b: (0, 0)),
            pl.BlockSpec(prep["sh2"].shape, lambda b: (0, 0)),
            pl.BlockSpec(prep["w3f"].shape, lambda b: (0, 0)),
            pl.BlockSpec(prep["sh3"].shape, lambda b: (0, 0)),
            pl.BlockSpec(prep["masks"].shape, lambda b: (0, 0)),
        ],
        out_specs=pl.BlockSpec((None, cout, dhw), lambda b: (b, 0, 0)),
        compiler_params=pltpu.CompilerParams(
            dimension_semantics=("parallel",),
            vmem_limit_bytes=vmem_limit),
        cost_estimate=cost,
    )(xk, prep["w1f"], prep["sh1"], prep["w2f"], prep["sh2"],
      prep["w3f"], prep["sh3"], prep["masks"])

    return out.reshape(B, cout, D, H, W)


# ----------------------------------------------------------------------------
# Deterministic synthetic parameters (conv weights + BN affine/running stats).
# ----------------------------------------------------------------------------
def init_params(key, in_channels=32, mid=8):
    expansion = 4
    cout = mid * expansion
    assert cout == in_channels, "identity residual path requires Cin == mid*4"
    ks = jax.random.split(key, 15)

    def u(k, shape, fan_in):
        bound = 1.0 / jnp.sqrt(float(fan_in))
        return jax.random.uniform(k, shape, jnp.float32, -bound, bound)

    return {
        "w1": u(ks[0], (mid, in_channels, 1, 1, 1), in_channels),
        "g1": jax.random.uniform(ks[1], (mid,), jnp.float32, 0.5, 1.5),
        "be1": u(ks[2], (mid,), mid),
        "m1": 0.1 * jax.random.normal(ks[3], (mid,), jnp.float32),
        "v1": jax.random.uniform(ks[4], (mid,), jnp.float32, 0.5, 1.5),

        "w2": u(ks[5], (mid, mid, 3, 3, 3), mid * 27),
        "g2": jax.random.uniform(ks[6], (mid,), jnp.float32, 0.5, 1.5),
        "be2": u(ks[7], (mid,), mid),
        "m2": 0.1 * jax.random.normal(ks[8], (mid,), jnp.float32),
        "v2": jax.random.uniform(ks[9], (mid,), jnp.float32, 0.5, 1.5),

        "w3": u(ks[10], (cout, mid, 1, 1, 1), mid),
        "g3": jax.random.uniform(ks[11], (cout,), jnp.float32, 0.5, 1.5),
        "be3": u(ks[12], (cout,), cout),
        "m3": 0.1 * jax.random.normal(ks[13], (cout,), jnp.float32),
        "v3": jax.random.uniform(ks[14], (cout,), jnp.float32, 0.5, 1.5),
    }


# ----------------------------------------------------------------------------
# Pure-JAX f32 reference (correctness check): Bottleneck3D forward with
# BatchNorm in inference mode.
# ----------------------------------------------------------------------------
def bottleneck3d_reference(params, x, eps=1e-5):
    def conv3d(y, w, stride=1, pad=0):
        return jax.lax.conv_general_dilated(
            y, w, (stride, stride, stride), [(pad, pad)] * 3,
            dimension_numbers=("NCDHW", "OIDHW", "NCDHW"))

    def bn(y, g, b, m, v):
        s = g / jnp.sqrt(v + eps)
        return (y * s[None, :, None, None, None]
                + (b - m * s)[None, :, None, None, None])

    out = jax.nn.relu(bn(conv3d(x, params["w1"]),
                         params["g1"], params["be1"], params["m1"], params["v1"]))
    out = jax.nn.relu(bn(conv3d(out, params["w2"], stride=1, pad=1),
                         params["g2"], params["be2"], params["m2"], params["v2"]))
    out = bn(conv3d(out, params["w3"]),
             params["g3"], params["be3"], params["m3"], params["v3"])
    return jax.nn.relu(out + x)


if __name__ == "__main__":
    key = jax.random.PRNGKey(0)
    k_param, k_x = jax.random.split(key)

    # Small shapes consistent with the module: in_channels = out_channels*4.
    B, Cin, D, H, W = 2, 32, 4, 8, 8     # out_channels (mid) = 8, expansion = 4
    params = init_params(k_param, in_channels=Cin, mid=8)
    x = jax.random.normal(k_x, (B, Cin, D, H, W), jnp.float32)

    prep = prepare_bottleneck(params, D, H, W)
    out = jax.block_until_ready(bottleneck3d_forward(prep, x))
    assert out.shape == (B, Cin, D, H, W), out.shape

    ref = jax.block_until_ready(bottleneck3d_reference(params, x))
    max_err = float(jnp.max(jnp.abs(out - ref)))
    # bf16 activations/weights through the MXU -> loosened tolerance vs f32 ref.
    assert jnp.allclose(out, ref, atol=5e-2, rtol=5e-2), max_err

    print("KERNEL_OK")
</pallas_src>

<mosaic_0001>
module attributes {stable_mosaic.version = 11 : i64} {
  func.func @_bottleneck3d_kernel(%arg0: i32, %arg1: memref<1x32x256xbf16, #tpu.memory_space<vmem>>, %arg2: memref<8x32xbf16, #tpu.memory_space<vmem>>, %arg3: memref<8x1xf32, #tpu.memory_space<vmem>>, %arg4: memref<8x216xbf16, #tpu.memory_space<vmem>>, %arg5: memref<8x1xf32, #tpu.memory_space<vmem>>, %arg6: memref<32x8xbf16, #tpu.memory_space<vmem>>, %arg7: memref<32x1xf32, #tpu.memory_space<vmem>>, %arg8: memref<27x256xbf16, #tpu.memory_space<vmem>>, %arg9: memref<1x32x256xf32, #tpu.memory_space<vmem>>) attributes {dimension_semantics = [#tpu.dimension_semantics<parallel>], iteration_bounds = array<i64: 2>, scalar_prefetch = 0 : i64, scratch_operands = 0 : i64, tpu.core_type = #tpu.core_type<tc>, window_params = [{transform_indices = @transform_0, window_bounds = array<i64: 1, 32, 256>}, {pipeline_mode = #tpu.pipeline_mode<synchronous>, transform_indices = @transform_1, window_bounds = array<i64: 8, 32>}, {pipeline_mode = #tpu.pipeline_mode<synchronous>, transform_indices = @transform_2, window_bounds = array<i64: 8, 1>}, {pipeline_mode = #tpu.pipeline_mode<synchronous>, transform_indices = @transform_3, window_bounds = array<i64: 8, 216>}, {pipeline_mode = #tpu.pipeline_mode<synchronous>, transform_indices = @transform_4, window_bounds = array<i64: 8, 1>}, {pipeline_mode = #tpu.pipeline_mode<synchronous>, transform_indices = @transform_5, window_bounds = array<i64: 32, 8>}, {pipeline_mode = #tpu.pipeline_mode<synchronous>, transform_indices = @transform_6, window_bounds = array<i64: 32, 1>}, {pipeline_mode = #tpu.pipeline_mode<synchronous>, transform_indices = @transform_7, window_bounds = array<i64: 27, 256>}, {transform_indices = @transform_8, window_bounds = array<i64: 1, 32, 256>}]} {
    %c0 = arith.constant 0 : index
    %c0_0 = arith.constant 0 : index
    %c0_1 = arith.constant 0 : index
    %0 = vector.load %arg1[%c0, %c0_0, %c0_1] : memref<1x32x256xbf16, #tpu.memory_space<vmem>>, vector<1x32x256xbf16>
    %1 = vector.shape_cast %0 : vector<1x32x256xbf16> to vector<32x256xbf16>
    %c0_2 = arith.constant 0 : index
    %c0_3 = arith.constant 0 : index
    %2 = vector.load %arg2[%c0_2, %c0_3] : memref<8x32xbf16, #tpu.memory_space<vmem>>, vector<8x32xbf16>
    %cst = arith.constant dense<0.000000e+00> : vector<8x256xf32>
    %3 = tpu.matmul %2, %1, %cst {dimension_numbers = #tpu.dot_dimension_numbers<[1], [0], [0], [1], [0, 0, 1, 1], [], []>} : vector<8x32xbf16>, vector<32x256xbf16>, vector<8x256xf32> -> vector<8x256xf32>
    %c0_4 = arith.constant 0 : index
    %c0_5 = arith.constant 0 : index
    %4 = vector.load %arg3[%c0_4, %c0_5] : memref<8x1xf32, #tpu.memory_space<vmem>>, vector<8x1xf32>
    %5 = vector.broadcast %4 : vector<8x1xf32> to vector<8x256xf32>
    %6 = arith.addf %3, %5 : vector<8x256xf32>
    %cst_6 = arith.constant 0.000000e+00 : f32
    %7 = vector.broadcast %cst_6 : f32 to vector<8x256xf32>
    %8 = arith.maximumf %6, %7 : vector<8x256xf32>
    %c0_7 = arith.constant 0 : index
    %c0_8 = arith.constant 0 : index
    %9 = vector.load %arg8[%c0_7, %c0_8] : memref<27x256xbf16, #tpu.memory_space<vmem>>, vector<27x256xbf16>
    %10 = arith.extf %9 : vector<27x256xbf16> to vector<27x256xf32>
    %c73_i32 = arith.constant 73 : i32
    %11 = tpu.dynamic_rotate %8 by %c73_i32 dim 1 : vector<8x256xf32>, i32 -> vector<8x256xf32>
    %12 = vector.extract_strided_slice %10 {offsets = [0, 0], sizes = [1, 256], strides = [1, 1]} : vector<27x256xf32> to vector<1x256xf32>
    %13 = vector.broadcast %12 : vector<1x256xf32> to vector<8x256xf32>
    %14 = arith.mulf %11, %13 : vector<8x256xf32>
    %c72_i32 = arith.constant 72 : i32
    %15 = tpu.dynamic_rotate %8 by %c72_i32 dim 1 : vector<8x256xf32>, i32 -> vector<8x256xf32>
    %16 = vector.extract_strided_slice %10 {offsets = [1, 0], sizes = [1, 256], strides = [1, 1]} : vector<27x256xf32> to vector<1x256xf32>
    %17 = vector.broadcast %16 : vector<1x256xf32> to vector<8x256xf32>
    %18 = arith.mulf %15, %17 : vector<8x256xf32>
    %c71_i32 = arith.constant 71 : i32
    %19 = tpu.dynamic_rotate %8 by %c71_i32 dim 1 : vector<8x256xf32>, i32 -> vector<8x256xf32>
    %20 = vector.extract_strided_slice %10 {offsets = [2, 0], sizes = [1, 256], strides = [1, 1]} : vector<27x256xf32> to vector<1x256xf32>
    %21 = vector.broadcast %20 : vector<1x256xf32> to vector<8x256xf32>
    %22 = arith.mulf %19, %21 : vector<8x256xf32>
    %c65_i32 = arith.constant 65 : i32
    %23 = tpu.dynamic_rotate %8 by %c65_i32 dim 1 : vector<8x256xf32>, i32 -> vector<8x256xf32>
    %24 = vector.extract_strided_slice %10 {offsets = [3, 0], sizes = [1, 256], strides = [1, 1]} : vector<27x256xf32> to vector<1x256xf32>
    %25 = vector.broadcast %24 : vector<1x256xf32> to vector<8x256xf32>
    %26 = arith.mulf %23, %25 : vector<8x256xf32>
    %c64_i32 = arith.constant 64 : i32
    %27 = tpu.dynamic_rotate %8 by %c64_i32 dim 1 : vector<8x256xf32>, i32 -> vector<8x256xf32>
    %28 = vector.extract_strided_slice %10 {offsets = [4, 0], sizes = [1, 256], strides = [1, 1]} : vector<27x256xf32> to vector<1x256xf32>
    %29 = vector.broadcast %28 : vector<1x256xf32> to vector<8x256xf32>
    %30 = arith.mulf %27, %29 : vector<8x256xf32>
    %c63_i32 = arith.constant 63 : i32
    %31 = tpu.dynamic_rotate %8 by %c63_i32 dim 1 : vector<8x256xf32>, i32 -> vector<8x256xf32>
    %32 = vector.extract_strided_slice %10 {offsets = [5, 0], sizes = [1, 256], strides = [1, 1]} : vector<27x256xf32> to vector<1x256xf32>
    %33 = vector.broadcast %32 : vector<1x256xf32> to vector<8x256xf32>
    %34 = arith.mulf %31, %33 : vector<8x256xf32>
    %c57_i32 = arith.constant 57 : i32
    %35 = tpu.dynamic_rotate %8 by %c57_i32 dim 1 : vector<8x256xf32>, i32 -> vector<8x256xf32>
    %36 = vector.extract_strided_slice %10 {offsets = [6, 0], sizes = [1, 256], strides = [1, 1]} : vector<27x256xf32> to vector<1x256xf32>
    %37 = vector.broadcast %36 : vector<1x256xf32> to vector<8x256xf32>
    %38 = arith.mulf %35, %37 : vector<8x256xf32>
    %c56_i32 = arith.constant 56 : i32
    %39 = tpu.dynamic_rotate %8 by %c56_i32 dim 1 : vector<8x256xf32>, i32 -> vector<8x256xf32>
    %40 = vector.extract_strided_slice %10 {offsets = [7, 0], sizes = [1, 256], strides = [1, 1]} : vector<27x256xf32> to vector<1x256xf32>
    %41 = vector.broadcast %40 : vector<1x256xf32> to vector<8x256xf32>
    %42 = arith.mulf %39, %41 : vector<8x256xf32>
    %c55_i32 = arith.constant 55 : i32
    %43 = tpu.dynamic_rotate %8 by %c55_i32 dim 1 : vector<8x256xf32>, i32 -> vector<8x256xf32>
    %44 = vector.extract_strided_slice %10 {offsets = [8, 0], sizes = [1, 256], strides = [1, 1]} : vector<27x256xf32> to vector<1x256xf32>
    %45 = vector.broadcast %44 : vector<1x256xf32> to vector<8x256xf32>
    %46 = arith.mulf %43, %45 : vector<8x256xf32>
    %c9_i32 = arith.constant 9 : i32
    %47 = tpu.dynamic_rotate %8 by %c9_i32 dim 1 : vector<8x256xf32>, i32 -> vector<8x256xf32>
    %48 = vector.extract_strided_slice %10 {offsets = [9, 0], sizes = [1, 256], strides = [1, 1]} : vector<27x256xf32> to vector<1x256xf32>
    %49 = vector.broadcast %48 : vector<1x256xf32> to vector<8x256xf32>
    %50 = arith.mulf %47, %49 : vector<8x256xf32>
    %c8_i32 = arith.constant 8 : i32
    %51 = tpu.dynamic_rotate %8 by %c8_i32 dim 1 : vector<8x256xf32>, i32 -> vector<8x256xf32>
    %52 = vector.extract_strided_slice %10 {offsets = [10, 0], sizes = [1, 256], strides = [1, 1]} : vector<27x256xf32> to vector<1x256xf32>
    %53 = vector.broadcast %52 : vector<1x256xf32> to vector<8x256xf32>
    %54 = arith.mulf %51, %53 : vector<8x256xf32>
    %c7_i32 = arith.constant 7 : i32
    %55 = tpu.dynamic_rotate %8 by %c7_i32 dim 1 : vector<8x256xf32>, i32 -> vector<8x256xf32>
    %56 = vector.extract_strided_slice %10 {offsets = [11, 0], sizes = [1, 256], strides = [1, 1]} : vector<27x256xf32> to vector<1x256xf32>
    %57 = vector.broadcast %56 : vector<1x256xf32> to vector<8x256xf32>
    %58 = arith.mulf %55, %57 : vector<8x256xf32>
    %c1_i32 = arith.constant 1 : i32
    %59 = tpu.dynamic_rotate %8 by %c1_i32 dim 1 : vector<8x256xf32>, i32 -> vector<8x256xf32>
    %60 = vector.extract_strided_slice %10 {offsets = [12, 0], sizes = [1, 256], strides = [1, 1]} : vector<27x256xf32> to vector<1x256xf32>
    %61 = vector.broadcast %60 : vector<1x256xf32> to vector<8x256xf32>
    %62 = arith.mulf %59, %61 : vector<8x256xf32>
    %c0_i32 = arith.constant 0 : i32
    %63 = tpu.dynamic_rotate %8 by %c0_i32 dim 1 : vector<8x256xf32>, i32 -> vector<8x256xf32>
    %64 = vector.extract_strided_slice %10 {offsets = [13, 0], sizes = [1, 256], strides = [1, 1]} : vector<27x256xf32> to vector<1x256xf32>
    %65 = vector.broadcast %64 : vector<1x256xf32> to vector<8x256xf32>
    %66 = arith.mulf %63, %65 : vector<8x256xf32>
    %c255_i32 = arith.constant 255 : i32
    %67 = tpu.dynamic_rotate %8 by %c255_i32 dim 1 : vector<8x256xf32>, i32 -> vector<8x256xf32>
    %68 = vector.extract_strided_slice %10 {offsets = [14, 0], sizes = [1, 256], strides = [1, 1]} : vector<27x256xf32> to vector<1x256xf32>
    %69 = vector.broadcast %68 : vector<1x256xf32> to vector<8x256xf32>
    %70 = arith.mulf %67, %69 : vector<8x256xf32>
    %c249_i32 = arith.constant 249 : i32
    %71 = tpu.dynamic_rotate %8 by %c249_i32 dim 1 : vector<8x256xf32>, i32 -> vector<8x256xf32>
    %72 = vector.extract_strided_slice %10 {offsets = [15, 0], sizes = [1, 256], strides = [1, 1]} : vector<27x256xf32> to vector<1x256xf32>
    %73 = vector.broadcast %72 : vector<1x256xf32> to vector<8x256xf32>
    %74 = arith.mulf %71, %73 : vector<8x256xf32>
    %c248_i32 = arith.constant 248 : i32
    %75 = tpu.dynamic_rotate %8 by %c248_i32 dim 1 : vector<8x256xf32>, i32 -> vector<8x256xf32>
    %76 = vector.extract_strided_slice %10 {offsets = [16, 0], sizes = [1, 256], strides = [1, 1]} : vector<27x256xf32> to vector<1x256xf32>
    %77 = vector.broadcast %76 : vector<1x256xf32> to vector<8x256xf32>
    %78 = arith.mulf %75, %77 : vector<8x256xf32>
    %c247_i32 = arith.constant 247 : i32
    %79 = tpu.dynamic_rotate %8 by %c247_i32 dim 1 : vector<8x256xf32>, i32 -> vector<8x256xf32>
    %80 = vector.extract_strided_slice %10 {offsets = [17, 0], sizes = [1, 256], strides = [1, 1]} : vector<27x256xf32> to vector<1x256xf32>
    %81 = vector.broadcast %80 : vector<1x256xf32> to vector<8x256xf32>
    %82 = arith.mulf %79, %81 : vector<8x256xf32>
    %c201_i32 = arith.constant 201 : i32
    %83 = tpu.dynamic_rotate %8 by %c201_i32 dim 1 : vector<8x256xf32>, i32 -> vector<8x256xf32>
    %84 = vector.extract_strided_slice %10 {offsets = [18, 0], sizes = [1, 256], strides = [1, 1]} : vector<27x256xf32> to vector<1x256xf32>
    %85 = vector.broadcast %84 : vector<1x256xf32> to vector<8x256xf32>
    %86 = arith.mulf %83, %85 : vector<8x256xf32>
    %c200_i32 = arith.constant 200 : i32
    %87 = tpu.dynamic_rotate %8 by %c200_i32 dim 1 : vector<8x256xf32>, i32 -> vector<8x256xf32>
    %88 = vector.extract_strided_slice %10 {offsets = [19, 0], sizes = [1, 256], strides = [1, 1]} : vector<27x256xf32> to vector<1x256xf32>
    %89 = vector.broadcast %88 : vector<1x256xf32> to vector<8x256xf32>
    %90 = arith.mulf %87, %89 : vector<8x256xf32>
    %c199_i32 = arith.constant 199 : i32
    %91 = tpu.dynamic_rotate %8 by %c199_i32 dim 1 : vector<8x256xf32>, i32 -> vector<8x256xf32>
    %92 = vector.extract_strided_slice %10 {offsets = [20, 0], sizes = [1, 256], strides = [1, 1]} : vector<27x256xf32> to vector<1x256xf32>
    %93 = vector.broadcast %92 : vector<1x256xf32> to vector<8x256xf32>
    %94 = arith.mulf %91, %93 : vector<8x256xf32>
    %c193_i32 = arith.constant 193 : i32
    %95 = tpu.dynamic_rotate %8 by %c193_i32 dim 1 : vector<8x256xf32>, i32 -> vector<8x256xf32>
    %96 = vector.extract_strided_slice %10 {offsets = [21, 0], sizes = [1, 256], strides = [1, 1]} : vector<27x256xf32> to vector<1x256xf32>
    %97 = vector.broadcast %96 : vector<1x256xf32> to vector<8x256xf32>
    %98 = arith.mulf %95, %97 : vector<8x256xf32>
    %c192_i32 = arith.constant 192 : i32
    %99 = tpu.dynamic_rotate %8 by %c192_i32 dim 1 : vector<8x256xf32>, i32 -> vector<8x256xf32>
    %100 = vector.extract_strided_slice %10 {offsets = [22, 0], sizes = [1, 256], strides = [1, 1]} : vector<27x256xf32> to vector<1x256xf32>
    %101 = vector.broadcast %100 : vector<1x256xf32> to vector<8x256xf32>
    %102 = arith.mulf %99, %101 : vector<8x256xf32>
    %c191_i32 = arith.constant 191 : i32
    %103 = tpu.dynamic_rotate %8 by %c191_i32 dim 1 : vector<8x256xf32>, i32 -> vector<8x256xf32>
    %104 = vector.extract_strided_slice %10 {offsets = [23, 0], sizes = [1, 256], strides = [1, 1]} : vector<27x256xf32> to vector<1x256xf32>
    %105 = vector.broadcast %104 : vector<1x256xf32> to vector<8x256xf32>
    %106 = arith.mulf %103, %105 : vector<8x256xf32>
    %c185_i32 = arith.constant 185 : i32
    %107 = tpu.dynamic_rotate %8 by %c185_i32 dim 1 : vector<8x256xf32>, i32 -> vector<8x256xf32>
    %108 = vector.extract_strided_slice %10 {offsets = [24, 0], sizes = [1, 256], strides = [1, 1]} : vector<27x256xf32> to vector<1x256xf32>
    %109 = vector.broadcast %108 : vector<1x256xf32> to vector<8x256xf32>
    %110 = arith.mulf %107, %109 : vector<8x256xf32>
    %c184_i32 = arith.constant 184 : i32
    %111 = tpu.dynamic_rotate %8 by %c184_i32 dim 1 : vector<8x256xf32>, i32 -> vector<8x256xf32>
    %112 = vector.extract_strided_slice %10 {offsets = [25, 0], sizes = [1, 256], strides = [1, 1]} : vector<27x256xf32> to vector<1x256xf32>
    %113 = vector.broadcast %112 : vector<1x256xf32> to vector<8x256xf32>
    %114 = arith.mulf %111, %113 : vector<8x256xf32>
    %c183_i32 = arith.constant 183 : i32
    %115 = tpu.dynamic_rotate %8 by %c183_i32 dim 1 : vector<8x256xf32>, i32 -> vector<8x256xf32>
    %116 = vector.extract_strided_slice %10 {offsets = [26, 0], sizes = [1, 256], strides = [1, 1]} : vector<27x256xf32> to vector<1x256xf32>
    %117 = vector.broadcast %116 : vector<1x256xf32> to vector<8x256xf32>
    %118 = arith.mulf %115, %117 : vector<8x256xf32>
    %119 = tpu.concatenate %14, %18, %22, %26, %30, %34, %38, %42, %46, %50, %54, %58, %62, %66, %70, %74 in 0 : vector<8x256xf32>, vector<8x256xf32>, vector<8x256xf32>, vector<8x256xf32>, vector<8x256xf32>, vector<8x256xf32>, vector<8x256xf32>, vector<8x256xf32>, vector<8x256xf32>, vector<8x256xf32>, vector<8x256xf32>, vector<8x256xf32>, vector<8x256xf32>, vector<8x256xf32>, vector<8x256xf32>, vector<8x256xf32> -> vector<128x256xf32>
    %120 = tpu.concatenate %78, %82, %86, %90, %94, %98, %102, %106, %110, %114, %118 in 0 : vector<8x256xf32>, vector<8x256xf32>, vector<8x256xf32>, vector<8x256xf32>, vector<8x256xf32>, vector<8x256xf32>, vector<8x256xf32>, vector<8x256xf32>, vector<8x256xf32>, vector<8x256xf32>, vector<8x256xf32> -> vector<88x256xf32>
    %121 = tpu.concatenate %119, %120 in 0 : vector<128x256xf32>, vector<88x256xf32> -> vector<216x256xf32>
    %122 = arith.truncf %121 : vector<216x256xf32> to vector<216x256xbf16>
    %c0_9 = arith.constant 0 : index
    %c0_10 = arith.constant 0 : index
    %123 = vector.load %arg4[%c0_9, %c0_10] : memref<8x216xbf16, #tpu.memory_space<vmem>>, vector<8x216xbf16>
    %cst_11 = arith.constant dense<0.000000e+00> : vector<8x256xf32>
    %124 = tpu.matmul %123, %122, %cst_11 {dimension_numbers = #tpu.dot_dimension_numbers<[1], [0], [0], [1], [0, 0, 1, 1], [], []>} : vector<8x216xbf16>, vector<216x256xbf16>, vector<8x256xf32> -> vector<8x256xf32>
    %c0_12 = arith.constant 0 : index
    %c0_13 = arith.constant 0 : index
    %125 = vector.load %arg5[%c0_12, %c0_13] : memref<8x1xf32, #tpu.memory_space<vmem>>, vector<8x1xf32>
    %126 = vector.broadcast %125 : vector<8x1xf32> to vector<8x256xf32>
    %127 = arith.addf %124, %126 : vector<8x256xf32>
    %cst_14 = arith.constant 0.000000e+00 : f32
    %128 = vector.broadcast %cst_14 : f32 to vector<8x256xf32>
    %129 = arith.maximumf %127, %128 : vector<8x256xf32>
    %130 = arith.truncf %129 : vector<8x256xf32> to vector<8x256xbf16>
    %c0_15 = arith.constant 0 : index
    %c0_16 = arith.constant 0 : index
    %131 = vector.load %arg6[%c0_15, %c0_16] : memref<32x8xbf16, #tpu.memory_space<vmem>>, vector<32x8xbf16>
    %cst_17 = arith.constant dense<0.000000e+00> : vector<32x256xf32>
    %132 = tpu.matmul %131, %130, %cst_17 {dimension_numbers = #tpu.dot_dimension_numbers<[1], [0], [0], [1], [0, 0, 1, 1], [], []>} : vector<32x8xbf16>, vector<8x256xbf16>, vector<32x256xf32> -> vector<32x256xf32>
    %c0_18 = arith.constant 0 : index
    %c0_19 = arith.constant 0 : index
    %133 = vector.load %arg7[%c0_18, %c0_19] : memref<32x1xf32, #tpu.memory_space<vmem>>, vector<32x1xf32>
    %134 = vector.broadcast %133 : vector<32x1xf32> to vector<32x256xf32>
    %135 = arith.addf %132, %134 : vector<32x256xf32>
    %c0_20 = arith.constant 0 : index
    %c0_21 = arith.constant 0 : index
    %c0_22 = arith.constant 0 : index
    %136 = vector.load %arg1[%c0_20, %c0_21, %c0_22] : memref<1x32x256xbf16, #tpu.memory_space<vmem>>, vector<1x32x256xbf16>
    %137 = vector.shape_cast %136 : vector<1x32x256xbf16> to vector<32x256xbf16>
    %138 = arith.extf %137 : vector<32x256xbf16> to vector<32x256xf32>
    %139 = arith.addf %135, %138 : vector<32x256xf32>
    %cst_23 = arith.constant 0.000000e+00 : f32
    %140 = vector.broadcast %cst_23 : f32 to vector<32x256xf32>
    %141 = arith.maximumf %139, %140 : vector<32x256xf32>
    %c0_24 = arith.constant 0 : index
    %c0_25 = arith.constant 0 : index
    %c0_26 = arith.constant 0 : index
    %142 = vector.load %arg9[%c0_24, %c0_25, %c0_26] : memref<1x32x256xf32, #tpu.memory_space<vmem>>, vector<1x32x256xf32>
    %143 = vector.shape_cast %142 : vector<1x32x256xf32> to vector<32x256xf32>
    %144 = vector.shape_cast %141 : vector<32x256xf32> to vector<1x32x256xf32>
    tpu.vector_store %arg9[%c0_24, %c0_25, %c0_26], %144 {strides = array<i32>} : memref<1x32x256xf32, #tpu.memory_space<vmem>>, vector<1x32x256xf32>,
    return
  }
  func.func @transform_0(%arg0: i32) -> (i32, i32, i32) {
    %c0_i32 = arith.constant 0 : i32
    %c0_i32_0 = arith.constant 0 : i32
    %c0_i32_1 = arith.constant 0 : i32
    return %arg0, %c0_i32, %c0_i32_0 : i32, i32, i32
  }
  func.func @transform_1(%arg0: i32) -> (i32, i32) {
    %c0_i32 = arith.constant 0 : i32
    %c0_i32_0 = arith.constant 0 : i32
    %c0_i32_1 = arith.constant 0 : i32
    return %c0_i32, %c0_i32_0 : i32, i32
  }
  func.func @transform_2(%arg0: i32) -> (i32, i32) {
    %c0_i32 = arith.constant 0 : i32
    %c0_i32_0 = arith.constant 0 : i32
    %c0_i32_1 = arith.constant 0 : i32
    return %c0_i32, %c0_i32_0 : i32, i32
  }
  func.func @transform_3(%arg0: i32) -> (i32, i32) {
    %c0_i32 = arith.constant 0 : i32
    %c0_i32_0 = arith.constant 0 : i32
    %c0_i32_1 = arith.constant 0 : i32
    return %c0_i32, %c0_i32_0 : i32, i32
  }
  func.func @transform_4(%arg0: i32) -> (i32, i32) {
    %c0_i32 = arith.constant 0 : i32
    %c0_i32_0 = arith.constant 0 : i32
    %c0_i32_1 = arith.constant 0 : i32
    return %c0_i32, %c0_i32_0 : i32, i32
  }
  func.func @transform_5(%arg0: i32) -> (i32, i32) {
    %c0_i32 = arith.constant 0 : i32
    %c0_i32_0 = arith.constant 0 : i32
    %c0_i32_1 = arith.constant 0 : i32
    return %c0_i32, %c0_i32_0 : i32, i32
  }
  func.func @transform_6(%arg0: i32) -> (i32, i32) {
    %c0_i32 = arith.constant 0 : i32
    %c0_i32_0 = arith.constant 0 : i32
    %c0_i32_1 = arith.constant 0 : i32
    return %c0_i32, %c0_i32_0 : i32, i32
  }
  func.func @transform_7(%arg0: i32) -> (i32, i32) {
    %c0_i32 = arith.constant 0 : i32
    %c0_i32_0 = arith.constant 0 : i32
    %c0_i32_1 = arith.constant 0 : i32
    return %c0_i32, %c0_i32_0 : i32, i32
  }
  func.func @transform_8(%arg0: i32) -> (i32, i32, i32) {
    %c0_i32 = arith.constant 0 : i32
    %c0_i32_0 = arith.constant 0 : i32
    %c0_i32_1 = arith.constant 0 : i32
    return %arg0, %c0_i32, %c0_i32_0 : i32, i32, i32
  }
}

</mosaic_0001>

<llo_original>
// kernel: tpu_custom_call.1
$region0: #{tpu_custom_call.1}
  #allocation0 [shape = 'u32[]', space=smem, size = 0x4, offset = 0x4, fixed_abs, tag = 'smem constant byte address 0x4 - core index']
  #allocation1 [shape = 'u32[144,128]{1,0:T(1,128)}', space=vmem, size = 0x12000, scoped, tag = 'internal scratch']
  %s0 = inlined_call_operand.vmem [shape: bf16[2,32,256], index: 0, kind: input, shape index: {}]
  %s1 = inlined_call_operand.hbm [shape: bf16[8,32], index: 1, kind: input, shape index: {}]
  %s2 = inlined_call_operand.vmem [shape: f32[8,1], index: 2, kind: input, shape index: {}]
  %s3 = inlined_call_operand.vmem [shape: bf16[8,216], index: 3, kind: input, shape index: {}]
  %s4 = inlined_call_operand.vmem [shape: f32[8,1], index: 4, kind: input, shape index: {}]
  %s5 = inlined_call_operand.vmem [shape: bf16[32,8], index: 5, kind: input, shape index: {}]
  %s6 = inlined_call_operand.vmem [shape: f32[32,1], index: 6, kind: input, shape index: {}]
  %s7 = inlined_call_operand.hbm [shape: bf16[27,256], index: 7, kind: input, shape index: {}]
  %s8 = inlined_call_operand.hbm [shape: f32[2,32,256], index: 8, kind: output, shape index: {}]
  %s9 = sld [smem:[#allocation0]]
  $region73: #{tpu_custom_call.1} parent=0
    _
  %s11 = ssub.s32 1, %s9
  %s12 = scalar_select 0, %s11, %s9
  $region1: #{tpu_custom_call.1} parent=0
    #allocation2 [shape = 'u8[2048]{0}', space=vmem, size = 0x800, scoped, tag = 'input window, operand 1, single buffered']
    #allocation3 [shape = 's32[2]{0}', space=sflag, size = 0x8, scoped, tag = 'scoped memory for tpu_custom_call.1']
    #allocation4 [shape = 's32[2]{0}', space=sflag, size = 0x8, scoped, tag = 'scoped memory for tpu_custom_call.1']
    #allocation5 [shape = 'u8[16384]{0}', space=vmem, size = 0x4000, scoped, tag = 'input window, operand 7, single buffered']
    #allocation6 [shape = 's32[1]{0}', space=sflag, size = 0x4, scoped, tag = 'scoped memory for tpu_custom_call.1']
    #allocation7 [shape = 'u8[65536]{0}', space=vmem, size = 0x10000, scoped, tag = 'output window, operand 0']
    %13 = vsyncpa [#allocation3], 0
    %14 = vsyncpa [#allocation6], 0
    %15 = vsyncpa [#allocation4], 0
    %s16 = scalar_lea.sflag [#allocation4], 1
    %17 = vsyncpa %s16, 0
    loop: start=0, step=1, limit=4
    $region2: #{tpu_custom_call.1} parent=1 // loop_pre_header
      _
    $region3: #{tpu_custom_call.1} parent=1 // loop_header
      %s19 = sphi 0, %s23
      %p20 = scmp.ge.s32.totalorder %s19, 4
      %s29 = sphi 0, %s31
      %s32 = sphi 0, %s29
      %s33 = sphi 0, %s32
      %s49 = sphi 0, %s33
      %s53 = sphi 0, %s53
      %s55 = sphi 0, %s53
      %s56 = sphi 0, %s55
      %s70 = sphi 0, %s56
      %s74 = sphi 0, %s74
      %s76 = sphi 0, %s74
      %s77 = sphi 0, %s76
      %s91 = sphi 0, %s77
      %s95 = sphi 0, %s95
      %s97 = sphi 0, %s95
      %s98 = sphi 0, %s97
      %s112 = sphi 0, %s98
      %s116 = sphi 0, %s116
      %s118 = sphi 0, %s116
      %s119 = sphi 0, %s118
      %s133 = sphi 0, %s119
      %s137 = sphi 0, %s137
      %s139 = sphi 0, %s137
      %s140 = sphi 0, %s139
      %s154 = sphi 0, %s140
      %s158 = sphi 0, %s158
      %s160 = sphi 0, %s158
      %s161 = sphi 0, %s160
      %s175 = sphi 0, %s161
      %s179 = sphi 0, %s179
      %s181 = sphi 0, %s179
      %s182 = sphi 0, %s181
      %s196 = sphi 0, %s182
      %s202 = sphi 0, %s204
      %s205 = sphi 0, %s202
      %s206 = sphi 0, %s205
      %s222 = sphi 0, %s206
    $region4: #{tpu_custom_call.1} parent=1 // loop_header_branch
      %22 = sbr.rel (%p20) target = $region8
    $region5: #{tpu_custom_call.1} parent=1 // loop_body
      %s24 = ssub.s32 %s19, 1
      %s25 = ssub.s32 %s19, 2
      %s26 = sadd.s32 %s19, 1
      %s27 = ssub.s32 %s19, %s26
      %p28 = scmp.eq.s32.totalorder %s27, 0
      %s30 = sadd.s32 %s29, 1
      %s31 = scalar_select %p28, %s29, %s30
      %p34 = pneg %p28
      %p35 = scmp.eq.s32.totalorder %s19, 1
      %p36 = por %p34, %p35
      %p37 = scmp.ne.s32.totalorder %s29, %s32
      %p38 = scmp.eq.s32.totalorder %s19, 0
      %p39 = por %p37, %p38
      %p40 = scmp.ne.s32.totalorder %s29, %s32
      %p41 = scmp.eq.s32.totalorder %s24, 1
      %p42 = por %p40, %p41
      %p43 = scmp.ne.s32.totalorder %s32, %s33
      %p44 = scmp.eq.s32.totalorder %s24, 0
      %p45 = por %p43, %p44
      %p46 = scmp.ne.s32.totalorder %s32, %s33
      %p47 = scmp.eq.s32.totalorder %s25, 1
      %p48 = por %p46, %p47
      %p50 = scmp.ne.s32.totalorder %s33, %s49
      %p51 = scmp.eq.s32.totalorder %s25, 0
      %p52 = por %p50, %p51
      %s54 = sadd.s32 %s53, 1
      %p57 = scmp.eq.s32.totalorder %s19, 1
      %p58 = scmp.ne.s32.totalorder %s53, %s55
      %p59 = scmp.eq.s32.totalorder %s19, 0
      %p60 = por %p58, %p59
      %p61 = scmp.ne.s32.totalorder %s53, %s55
      %p62 = scmp.eq.s32.totalorder %s24, 1
      %p63 = por %p61, %p62
      %p64 = scmp.ne.s32.totalorder %s55, %s56
      %p65 = scmp.eq.s32.totalorder %s24, 0
      %p66 = por %p64, %p65
      %p67 = scmp.ne.s32.totalorder %s55, %s56
      %p68 = scmp.eq.s32.totalorder %s25, 1
      %p69 = por %p67, %p68
      %p71 = scmp.ne.s32.totalorder %s56, %s70
      %p72 = scmp.eq.s32.totalorder %s25, 0
      %p73 = por %p71, %p72
      %s75 = sadd.s32 %s74, 1
      %p78 = scmp.eq.s32.totalorder %s19, 1
      %p79 = scmp.ne.s32.totalorder %s74, %s76
      %p80 = scmp.eq.s32.totalorder %s19, 0
      %p81 = por %p79, %p80
      %p82 = scmp.ne.s32.totalorder %s74, %s76
      %p83 = scmp.eq.s32.totalorder %s24, 1
      %p84 = por %p82, %p83
      %p85 = scmp.ne.s32.totalorder %s76, %s77
      %p86 = scmp.eq.s32.totalorder %s24, 0
      %p87 = por %p85, %p86
      %p88 = scmp.ne.s32.totalorder %s76, %s77
      %p89 = scmp.eq.s32.totalorder %s25, 1
      %p90 = por %p88, %p89
      %p92 = scmp.ne.s32.totalorder %s77, %s91
      %p93 = scmp.eq.s32.totalorder %s25, 0
      %p94 = por %p92, %p93
      %s96 = sadd.s32 %s95, 1
      %p99 = scmp.eq.s32.totalorder %s19, 1
      %p100 = scmp.ne.s32.totalorder %s95, %s97
      %p101 = scmp.eq.s32.totalorder %s19, 0
      %p102 = por %p100, %p101
      %p103 = scmp.ne.s32.totalorder %s95, %s97
      %p104 = scmp.eq.s32.totalorder %s24, 1
      %p105 = por %p103, %p104
      %p106 = scmp.ne.s32.totalorder %s97, %s98
      %p107 = scmp.eq.s32.totalorder %s24, 0
      %p108 = por %p106, %p107
      %p109 = scmp.ne.s32.totalorder %s97, %s98
      %p110 = scmp.eq.s32.totalorder %s25, 1
      %p111 = por %p109, %p110
      %p113 = scmp.ne.s32.totalorder %s98, %s112
      %p114 = scmp.eq.s32.totalorder %s25, 0
      %p115 = por %p113, %p114
      %s117 = sadd.s32 %s116, 1
      %p120 = scmp.eq.s32.totalorder %s19, 1
      %p121 = scmp.ne.s32.totalorder %s116, %s118
      %p122 = scmp.eq.s32.totalorder %s19, 0
      %p123 = por %p121, %p122
      %p124 = scmp.ne.s32.totalorder %s116, %s118
      %p125 = scmp.eq.s32.totalorder %s24, 1
      %p126 = por %p124, %p125
      %p127 = scmp.ne.s32.totalorder %s118, %s119
      %p128 = scmp.eq.s32.totalorder %s24, 0
      %p129 = por %p127, %p128
      %p130 = scmp.ne.s32.totalorder %s118, %s119
      %p131 = scmp.eq.s32.totalorder %s25, 1
      %p132 = por %p130, %p131
      %p134 = scmp.ne.s32.totalorder %s119, %s133
      %p135 = scmp.eq.s32.totalorder %s25, 0
      %p136 = por %p134, %p135
      %s138 = sadd.s32 %s137, 1
      %p141 = scmp.eq.s32.totalorder %s19, 1
      %p142 = scmp.ne.s32.totalorder %s137, %s139
      %p143 = scmp.eq.s32.totalorder %s19, 0
      %p144 = por %p142, %p143
      %p145 = scmp.ne.s32.totalorder %s137, %s139
      %p146 = scmp.eq.s32.totalorder %s24, 1
      %p147 = por %p145, %p146
      %p148 = scmp.ne.s32.totalorder %s139, %s140
      %p149 = scmp.eq.s32.totalorder %s24, 0
      %p150 = por %p148, %p149
      %p151 = scmp.ne.s32.totalorder %s139, %s140
      %p152 = scmp.eq.s32.totalorder %s25, 1
      %p153 = por %p151, %p152
      %p155 = scmp.ne.s32.totalorder %s140, %s154
      %p156 = scmp.eq.s32.totalorder %s25, 0
      %p157 = por %p155, %p156
      %s159 = sadd.s32 %s158, 1
      %p162 = scmp.eq.s32.totalorder %s19, 1
      %p163 = scmp.ne.s32.totalorder %s158, %s160
      %p164 = scmp.eq.s32.totalorder %s19, 0
      %p165 = por %p163, %p164
      %p166 = scmp.ne.s32.totalorder %s158, %s160
      %p167 = scmp.eq.s32.totalorder %s24, 1
      %p168 = por %p166, %p167
      %p169 = scmp.ne.s32.totalorder %s160, %s161
      %p170 = scmp.eq.s32.totalorder %s24, 0
      %p171 = por %p169, %p170
      %p172 = scmp.ne.s32.totalorder %s160, %s161
      %p173 = scmp.eq.s32.totalorder %s25, 1
      %p174 = por %p172, %p173
      %p176 = scmp.ne.s32.totalorder %s161, %s175
      %p177 = scmp.eq.s32.totalorder %s25, 0
      %p178 = por %p176, %p177
      %s180 = sadd.s32 %s179, 1
      %p183 = scmp.eq.s32.totalorder %s19, 1
      %p184 = scmp.ne.s32.totalorder %s179, %s181
      %p185 = scmp.eq.s32.totalorder %s19, 0
      %p186 = por %p184, %p185
      %p187 = scmp.ne.s32.totalorder %s179, %s181
      %p188 = scmp.eq.s32.totalorder %s24, 1
      %p189 = por %p187, %p188
      %p190 = scmp.ne.s32.totalorder %s181, %s182
      %p191 = scmp.eq.s32.totalorder %s24, 0
      %p192 = por %p190, %p191
      %p193 = scmp.ne.s32.totalorder %s181, %s182
      %p194 = scmp.eq.s32.totalorder %s25, 1
      %p195 = por %p193, %p194
      %p197 = scmp.ne.s32.totalorder %s182, %s196
      %p198 = scmp.eq.s32.totalorder %s25, 0
      %p199 = por %p197, %p198
      %s200 = ssub.s32 %s19, %s26
      %p201 = scmp.eq.s32.totalorder %s200, 0
      %s203 = sadd.s32 %s202, 1
      %s204 = scalar_select %p201, %s202, %s203
      %p207 = pneg %p201
      %p208 = scmp.eq.s32.totalorder %s19, 1
      %p209 = por %p207, %p208
      %p210 = scmp.ne.s32.totalorder %s202, %s205
      %p211 = scmp.eq.s32.totalorder %s19, 0
      %p212 = por %p210, %p211
      %p213 = scmp.ne.s32.totalorder %s202, %s205
      %p214 = scmp.eq.s32.totalorder %s24, 1
      %p215 = por %p213, %p214
      %p216 = scmp.ne.s32.totalorder %s205, %s206
      %p217 = scmp.eq.s32.totalorder %s24, 0
      %p218 = por %p216, %p217
      %p219 = scmp.ne.s32.totalorder %s205, %s206
      %p220 = scmp.eq.s32.totalorder %s25, 1
      %p221 = por %p219, %p220
      %p223 = scmp.ne.s32.totalorder %s206, %s222
      %p224 = scmp.eq.s32.totalorder %s25, 0
      %p225 = por %p223, %p224
      %p226 = scmp.le.s32.totalorder 1, %s19
      %p227 = scmp.lt.s32.totalorder %s19, 3
      %p228 = pnand %p226, %p227
      %p229 = pneg %p228
      // Predicated region
      $region9: #{tpu_custom_call.1} parent=5 // pred_check
        _
      $region10: #{tpu_custom_call.1} parent=5 // pred_check_branch
        %231 = sbr.rel (%p228) target = $region12
      $region11: #{tpu_custom_call.1} parent=5 // pred_region
        %s232 = ssub.s32 %s19, 1
        // Predicated region
        $region13: #{tpu_custom_call.1} parent=11 // pred_check
          %p233 = pneg %p66
        $region14: #{tpu_custom_call.1} parent=11 // pred_check_branch
          %235 = sbr.rel (%p233) target = $region16
        $region15: #{tpu_custom_call.1} parent=11 // pred_region
          %s237 = ssub.s32 64, 64
          %238 = vsyncadd [#allocation3], %s237
          %s240 = sshll.u32 [#allocation2], 4
          %s241 = int_to_ptr.vmem [resolvable:$true] %s240
          %243 = dma.hbm_to_vmem [thread:$0]  %s1, 64, %s241, [#allocation3]
        $region16: #{tpu_custom_call.1} parent=11 // pred_fallthru
          _
        // Predicated region
        $region17: #{tpu_custom_call.1} parent=11 // pred_check
          %p244 = pneg %p87
        $region18: #{tpu_custom_call.1} parent=11 // pred_check_branch
          %246 = sbr.rel (%p244) target = $region20
        $region19: #{tpu_custom_call.1} parent=11 // pred_region
          _
        $region20: #{tpu_custom_call.1} parent=11 // pred_fallthru
          _
        // Predicated region
        $region21: #{tpu_custom_call.1} parent=11 // pred_check
          %p247 = pneg %p108
        $region22: #{tpu_custom_call.1} parent=11 // pred_check_branch
          %249 = sbr.rel (%p247) target = $region24
        $region23: #{tpu_custom_call.1} parent=11 // pred_region
          _
        $region24: #{tpu_custom_call.1} parent=11 // pred_fallthru
          _
        // Predicated region
        $region25: #{tpu_custom_call.1} parent=11 // pred_check
          %p250 = pneg %p129
        $region26: #{tpu_custom_call.1} parent=11 // pred_check_branch
          %252 = sbr.rel (%p250) target = $region28
        $region27: #{tpu_custom_call.1} parent=11 // pred_region
          _
        $region28: #{tpu_custom_call.1} parent=11 // pred_fallthru
          _
        // Predicated region
        $region29: #{tpu_custom_call.1} parent=11 // pred_check
          %p253 = pneg %p150
        $region30: #{tpu_custom_call.1} parent=11 // pred_check_branch
          %255 = sbr.rel (%p253) target = $region32
        $region31: #{tpu_custom_call.1} parent=11 // pred_region
          _
        $region32: #{tpu_custom_call.1} parent=11 // pred_fallthru
          _
        // Predicated region
        $region33: #{tpu_custom_call.1} parent=11 // pred_check
          %p256 = pneg %p171
        $region34: #{tpu_custom_call.1} parent=11 // pred_check_branch
          %258 = sbr.rel (%p256) target = $region36
        $region35: #{tpu_custom_call.1} parent=11 // pred_region
          _
        $region36: #{tpu_custom_call.1} parent=11 // pred_fallthru
          _
        // Predicated region
        $region37: #{tpu_custom_call.1} parent=11 // pred_check
          %p259 = pneg %p192
        $region38: #{tpu_custom_call.1} parent=11 // pred_check_branch
          %261 = sbr.rel (%p259) target = $region40
        $region39: #{tpu_custom_call.1} parent=11 // pred_region
          %s263 = ssub.s32 512, 512
          %264 = vsyncadd [#allocation6], %s263
          %s265 = sshll.u32 [#allocation5], 4
          %s266 = int_to_ptr.vmem [resolvable:$true] %s265
          %271 = dma.hbm_to_vmem [thread:$0]  %s7, 512, %s266, [#allocation6], 128, 128, 8
        $region40: #{tpu_custom_call.1} parent=11 // pred_fallthru
          _
      $region12: #{tpu_custom_call.1} parent=5 // pred_fallthru
        _
      %p272 = scmp.lt.s32.totalorder %s19, 2
      // Predicated region
      $region41: #{tpu_custom_call.1} parent=5 // pred_check
        %p273 = pneg %p272
      $region42: #{tpu_custom_call.1} parent=5 // pred_check_branch
        %275 = sbr.rel (%p273) target = $region44
      $region43: #{tpu_custom_call.1} parent=5 // pred_region
        // Predicated region
        $region45: #{tpu_custom_call.1} parent=43 // pred_check
          %p276 = pneg %p39
        $region46: #{tpu_custom_call.1} parent=43 // pred_check_branch
          %278 = sbr.rel (%p276) target = $region48
        $region47: #{tpu_custom_call.1} parent=43 // pred_region
          %p279 = scmp.lt.s32.totalorder %s19, 1
          %s280 = scalar_select %p279, %s19, 1
          %s281 = smul.addr %s280, 8
          %s282 = smul.addr %s281, 4
          %s283 = scalar_lea.vmem %s0, %s282
        $region48: #{tpu_custom_call.1} parent=43 // pred_fallthru
          _
      $region44: #{tpu_custom_call.1} parent=5 // pred_fallthru
        _
      %p284 = scmp.le.s32.totalorder 1, %s19
      %p285 = scmp.lt.s32.totalorder %s19, 3
      %p286 = pnand %p284, %p285
      %p287 = pneg %p286
      // Predicated region
      $region49: #{tpu_custom_call.1} parent=5 // pred_check
        _
      $region50: #{tpu_custom_call.1} parent=5 // pred_check_branch
        %289 = sbr.rel (%p286) target = $region52
      $region51: #{tpu_custom_call.1} parent=5 // pred_region
        %s290 = ssub.s32 %s19, 1
        // Predicated region
        $region53: #{tpu_custom_call.1} parent=51 // pred_check
          %p291 = pneg %p66
        $region54: #{tpu_custom_call.1} parent=51 // pred_check_branch
          %293 = sbr.rel (%p291) target = $region56
        $region55: #{tpu_custom_call.1} parent=51 // pred_region
          %294 = dma.done [#allocation3], 64
        $region56: #{tpu_custom_call.1} parent=51 // pred_fallthru
          _
        // Predicated region
        $region57: #{tpu_custom_call.1} parent=51 // pred_check
          %p295 = pneg %p192
        $region58: #{tpu_custom_call.1} parent=51 // pred_check_branch
          %297 = sbr.rel (%p295) target = $region60
        $region59: #{tpu_custom_call.1} parent=51 // pred_region
          %298 = dma.done [#allocation6], 512
        $region60: #{tpu_custom_call.1} parent=51 // pred_fallthru
          _
        %p299 = scmp.lt.s32.totalorder %s24, 1
        %s300 = scalar_select %p299, %s24, 1
        %s301 = smul.addr %s300, 8
        %s302 = smul.addr %s301, 4
        %s303 = scalar_lea.vmem %s0, %s302
        %p304 = pneg %p45
        %p305 = pneg %p42
        %p306 = pneg %p66
        %p307 = pneg %p63
        %p308 = pneg %p87
        %p309 = pneg %p84
        %p310 = pneg %p108
        %p311 = pneg %p105
        %p312 = pneg %p129
        %p313 = pneg %p126
        %p314 = pneg %p150
        %p315 = pneg %p147
        %p316 = pneg %p171
        %p317 = pneg %p168
        %p318 = pneg %p192
        %p319 = pneg %p189
        %p320 = pneg %p218
        %p321 = pneg %p215
        %s322 = sand.u32 %s205, 1
        %s323 = scalar_lea.sflag [#allocation4], %s322
        %s324 = sand.u32 %s205, 1
        %s325 = smul.addr %s324, 64
        %s326 = scalar_lea.vmem [#allocation7], %s325
        %p327 = scmp.lt.s32.totalorder %s24, 1
        %s328 = scalar_select %p327, %s24, 1
        %s329 = smul.addr %s328, 8
        %s330 = smul.addr %s329, 4
        %s331 = scalar_lea.vmem %s0, %s330
        %v333 = vld [vmem:[%s331] sm:$0xff]
        %v334 = vld [vmem:[%s331 + $0x8] sm:$0xff]
        %v335 = vld [vmem:[%s331 + $0x10] sm:$0xff]
        %v336 = vld [vmem:[%s331 + $0x18] sm:$0xff]
        %v337 = vld [vmem:[#allocation2] sm:$0xf]
        %v338 = vld [vmem:[%s2] sm:$0xff]
        %340 = vset.pattern.permute.xlu0 0
        %341 = vperm.xlu0 %340, %v338
        %v342 = vpop.permute.xlu0 %341
        %v348 = vunpack.c.l.b16 %v333
        %v349 = vunpack.c.h.b16 %v333
        %v350 = vunpack.c.l.b16 %v334
        %v351 = vunpack.c.h.b16 %v334
        %v352 = vunpack.c.l.b16 %v335
        %v353 = vunpack.c.h.b16 %v335
        %v354 = vunpack.c.l.b16 %v336
        %v355 = vunpack.c.h.b16 %v336
        %v356 = vpack.c.b16 %v350, %v348
        %v357 = vpack.c.b16 %v351, %v349
        %v358 = vpack.c.b16 %v354, %v352
        %v359 = vpack.c.b16 %v355, %v353
        %vm364 = vcmask 261120
        %v366 = vsel %vm364, %v337, 0
        %368 = vmatprep.subr.bf16.mxu0 0
        %369 = vmatpush1.bf16.msra.mxu0 0
        %370 = vmatprep.subr.bf16.mxu0 0
        %371 = vmatpush1.bf16.msra.mxu0 0
        %372 = vmatprep.subr.bf16.mxu0 0
        %373 = vmatpush1.bf16.msra.mxu0 0
        %374 = vmatprep.subr.bf16.mxu0 0
        %375 = vmatpush1.bf16.msra.mxu0 0
        %376 = vmatprep.subr.bf16.mxu0 0
        %377 = vmatpush1.bf16.msra.mxu0 0
        %378 = vmatprep.subr.bf16.mxu0 0
        %379 = vmatpush1.bf16.msra.mxu0 0
        %380 = vmatprep.subr.bf16.mxu0 %v359
        %381 = vmatpush1.bf16.msra.mxu0 %v358
        %382 = vmatprep.subr.bf16.mxu0 %v357
        %383 = vmatpush1.bf16.msra.mxu0 %v356
        %384 = vmatprep.subr.bf16.mxu0 0
        %385 = vmatpush2.bf16.msra.mxu0 0
        %386 = vmatprep.subr.bf16.mxu0 0
        %387 = vmatpush2.bf16.msra.mxu0 0
        %388 = vmatprep.subr.bf16.mxu0 0
        %389 = vmatpush2.bf16.msra.mxu0 0
        %390 = vmatprep.subr.bf16.mxu0 0
        %391 = vmatpush2.bf16.msra.mxu0 0
        %392 = vmatprep.subr.bf16.mxu0 0
        %393 = vmatpush2.bf16.msra.mxu0 0
        %394 = vmatprep.subr.bf16.mxu0 0
        %395 = vmatpush2.bf16.msra.mxu0 0
        %396 = vmatprep.subr.bf16.mxu0 0
        %397 = vmatpush2.bf16.msra.mxu0 0
        %398 = vmatprep.subr.bf16.mxu0 0
        %399 = vmatpush2.bf16.msra.mxu0 0
        %400 = vmatprep.mubr.bf16.mxu0 0
        %401 = vmatmul.mubr.bf16.gmra.mxu0 %v366
        %v402 = vpop.f32.mrf.mxu0
        %v403 = vadd.f32 %v342, %v402
        %v404 = vpop.f32.mrf.mxu0
        %v405 = vadd.f32 %v342, %v404
        %v406 = vpop.f32.mrf.mxu0
        %v407 = vpop.f32.mrf.mxu0
        %408 = vdwg.mxu0
        %v409 = vmax.f32 %v403, 0.0
        %v410 = vmax.f32 %v405, 0.0
        %v411 = vld [vmem:[#allocation5] sm:$0xff]
        %v412 = vld [vmem:[#allocation5 + $0x8] sm:$0xff]
        %v413 = vld [vmem:[#allocation5 + $0x10] sm:$0xff]
        %v414 = vld [vmem:[#allocation5 + $0x18] sm:$0x33]
        %v415 = vunpack.c.l.bf16 %v411
        %v416 = vunpack.c.h.bf16 %v411
        %v417 = vunpack.c.l.bf16 %v412
        %v418 = vunpack.c.h.bf16 %v412
        %v419 = vunpack.c.l.bf16 %v413
        %v420 = vunpack.c.h.bf16 %v413
        %v421 = vunpack.c.l.bf16 %v414
        %v422 = vunpack.c.h.bf16 %v414
        %423 = vrot.lane.b32.xlu0 %v409, 73
        %v424 = vpop.permute.xlu0 %423
        %425 = vrot.lane.b32.xlu0 %v410, 73
        %v426 = vpop.permute.xlu0 %425
        %v427 = vlaneseq
        %v428 = vand.u32 %v427, 127
        %vm429 = vcmp.lt.s32.totalorder %v428, 73
        %v430 = vsel %vm429, %v424, %v426
        %v431 = vsel %vm429, %v426, %v424
        %v432 = vlaneseq
        %v433 = vshrl.u32 %v432, 7
        %v434 = vsub.s32 0, %v433
        %v435 = vrot.slane %v415, %v434
        %v436 = vlaneseq
        %v437 = vshrl.u32 %v436, 7
        %v438 = vsub.s32 0, %v437
        %v439 = vrot.slane %v416, %v438
        %v440 = vmul.f32 %v431, %v435
        %v441 = vmul.f32 %v430, %v439
        %442 = vrot.lane.b32.xlu0 %v409, 72
        %v443 = vpop.permute.xlu0 %442
        %444 = vrot.lane.b32.xlu0 %v410, 72
        %v445 = vpop.permute.xlu0 %444
        %vm446 = vcmp.lt.s32.totalorder %v428, 72
        %v447 = vsel %vm446, %v443, %v445
        %v448 = vsel %vm446, %v445, %v443
        %v449 = vlaneseq
        %v450 = vshrl.u32 %v449, 7
        %v451 = vsub.s32 1, %v450
        %v452 = vrot.slane %v415, %v451
        %v453 = vlaneseq
        %v454 = vshrl.u32 %v453, 7
        %v455 = vsub.s32 1, %v454
        %v456 = vrot.slane %v416, %v455
        %v457 = vmul.f32 %v448, %v452
        %v458 = vmul.f32 %v447, %v456
        %459 = vrot.lane.b32.xlu0 %v409, 71
        %v460 = vpop.permute.xlu0 %459
        %461 = vrot.lane.b32.xlu0 %v410, 71
        %v462 = vpop.permute.xlu0 %461
        %vm463 = vcmp.lt.s32.totalorder %v428, 71
        %v464 = vsel %vm463, %v460, %v462
        %v465 = vsel %vm463, %v462, %v460
        %v466 = vlaneseq
        %v467 = vshrl.u32 %v466, 7
        %v468 = vsub.s32 2, %v467
        %v469 = vrot.slane %v415, %v468
        %v470 = vlaneseq
        %v471 = vshrl.u32 %v470, 7
        %v472 = vsub.s32 2, %v471
        %v473 = vrot.slane %v416, %v472
        %v474 = vmul.f32 %v465, %v469
        %v475 = vmul.f32 %v464, %v473
        %476 = vrot.lane.b32.xlu0 %v409, 65
        %v477 = vpop.permute.xlu0 %476
        %478 = vrot.lane.b32.xlu0 %v410, 65
        %v479 = vpop.permute.xlu0 %478
        %vm480 = vcmp.lt.s32.totalorder %v428, 65
        %v481 = vsel %vm480, %v477, %v479
        %v482 = vsel %vm480, %v479, %v477
        %v483 = vlaneseq
        %v484 = vshrl.u32 %v483, 7
        %v485 = vsub.s32 3, %v484
        %v486 = vrot.slane %v415, %v485
        %v487 = vlaneseq
        %v488 = vshrl.u32 %v487, 7
        %v489 = vsub.s32 3, %v488
        %v490 = vrot.slane %v416, %v489
        %v491 = vmul.f32 %v482, %v486
        %v492 = vmul.f32 %v481, %v490
        %493 = vrot.lane.b32.xlu0 %v409, 64
        %v494 = vpop.permute.xlu0 %493
        %495 = vrot.lane.b32.xlu0 %v410, 64
        %v496 = vpop.permute.xlu0 %495
        %vm497 = vcmp.lt.s32.totalorder %v428, 64
        %v498 = vsel %vm497, %v494, %v496
        %v499 = vsel %vm497, %v496, %v494
        %v500 = vlaneseq
        %v501 = vshrl.u32 %v500, 7
        %v502 = vsub.s32 4, %v501
        %v503 = vrot.slane %v415, %v502
        %v504 = vlaneseq
        %v505 = vshrl.u32 %v504, 7
        %v506 = vsub.s32 4, %v505
        %v507 = vrot.slane %v416, %v506
        %v508 = vmul.f32 %v499, %v503
        %v509 = vmul.f32 %v498, %v507
        %510 = vrot.lane.b32.xlu0 %v409, 63
        %v511 = vpop.permute.xlu0 %510
        %512 = vrot.lane.b32.xlu0 %v410, 63
        %v513 = vpop.permute.xlu0 %512
        %vm514 = vcmp.lt.s32.totalorder %v428, 63
        %v515 = vsel %vm514, %v511, %v513
        %v516 = vsel %vm514, %v513, %v511
        %v517 = vlaneseq
        %v518 = vshrl.u32 %v517, 7
        %v519 = vsub.s32 5, %v518
        %v520 = vrot.slane %v415, %v519
        %v521 = vlaneseq
        %v522 = vshrl.u32 %v521, 7
        %v523 = vsub.s32 5, %v522
        %v524 = vrot.slane %v416, %v523
        %v525 = vmul.f32 %v516, %v520
        %v526 = vmul.f32 %v515, %v524
        %527 = vrot.lane.b32.xlu0 %v409, 57
        %v528 = vpop.permute.xlu0 %527
        %529 = vrot.lane.b32.xlu0 %v410, 57
        %v530 = vpop.permute.xlu0 %529
        %vm531 = vcmp.lt.s32.totalorder %v428, 57
        %v532 = vsel %vm531, %v528, %v530
        %v533 = vsel %vm531, %v530, %v528
        %v534 = vlaneseq
        %v535 = vshrl.u32 %v534, 7
        %v536 = vsub.s32 6, %v535
        %v537 = vrot.slane %v415, %v536
        %v538 = vlaneseq
        %v539 = vshrl.u32 %v538, 7
        %v540 = vsub.s32 6, %v539
        %v541 = vrot.slane %v416, %v540
        %v542 = vmul.f32 %v533, %v537
        %v543 = vmul.f32 %v532, %v541
        %544 = vrot.lane.b32.xlu0 %v409, 56
        %v545 = vpop.permute.xlu0 %544
        %546 = vrot.lane.b32.xlu0 %v410, 56
        %v547 = vpop.permute.xlu0 %546
        %vm548 = vcmp.lt.s32.totalorder %v428, 56
        %v549 = vsel %vm548, %v545, %v547
        %v550 = vsel %vm548, %v547, %v545
        %v551 = vlaneseq
        %v552 = vshrl.u32 %v551, 7
        %v553 = vsub.s32 7, %v552
        %v554 = vrot.slane %v415, %v553
        %v555 = vlaneseq
        %v556 = vshrl.u32 %v555, 7
        %v557 = vsub.s32 7, %v556
        %v558 = vrot.slane %v416, %v557
        %v559 = vmul.f32 %v550, %v554
        %v560 = vmul.f32 %v549, %v558
        %561 = vrot.lane.b32.xlu0 %v409, 55
        %v562 = vpop.permute.xlu0 %561
        %563 = vrot.lane.b32.xlu0 %v410, 55
        %v564 = vpop.permute.xlu0 %563
        %vm565 = vcmp.lt.s32.totalorder %v428, 55
        %v566 = vsel %vm565, %v562, %v564
        %v567 = vsel %vm565, %v564, %v562
        %v568 = vlaneseq
        %v569 = vshrl.u32 %v568, 7
        %v570 = vsub.s32 0, %v569
        %v571 = vrot.slane %v417, %v570
        %v572 = vlaneseq
        %v573 = vshrl.u32 %v572, 7
        %v574 = vsub.s32 0, %v573
        %v575 = vrot.slane %v418, %v574
        %v576 = vmul.f32 %v567, %v571
        %v577 = vmul.f32 %v566, %v575
        %578 = vrot.lane.b32.xlu0 %v409, 9
        %v579 = vpop.permute.xlu0 %578
        %580 = vrot.lane.b32.xlu0 %v410, 9
        %v581 = vpop.permute.xlu0 %580
        %vm582 = vcmp.lt.s32.totalorder %v428, 9
        %v583 = vsel %vm582, %v579, %v581
        %v584 = vsel %vm582, %v581, %v579
        %v585 = vlaneseq
        %v586 = vshrl.u32 %v585, 7
        %v587 = vsub.s32 1, %v586
        %v588 = vrot.slane %v417, %v587
        %v589 = vlaneseq
        %v590 = vshrl.u32 %v589, 7
        %v591 = vsub.s32 1, %v590
        %v592 = vrot.slane %v418, %v591
        %v593 = vmul.f32 %v584, %v588
        %v594 = vmul.f32 %v583, %v592
        %595 = vrot.lane.b32.xlu0 %v409, 8
        %v596 = vpop.permute.xlu0 %595
        %597 = vrot.lane.b32.xlu0 %v410, 8
        %v598 = vpop.permute.xlu0 %597
        %vm599 = vcmp.lt.s32.totalorder %v428, 8
        %v600 = vsel %vm599, %v596, %v598
        %v601 = vsel %vm599, %v598, %v596
        %v602 = vlaneseq
        %v603 = vshrl.u32 %v602, 7
        %v604 = vsub.s32 2, %v603
        %v605 = vrot.slane %v417, %v604
        %v606 = vlaneseq
        %v607 = vshrl.u32 %v606, 7
        %v608 = vsub.s32 2, %v607
        %v609 = vrot.slane %v418, %v608
        %v610 = vmul.f32 %v601, %v605
        %v611 = vmul.f32 %v600, %v609
        %612 = vrot.lane.b32.xlu0 %v409, 7
        %v613 = vpop.permute.xlu0 %612
        %614 = vrot.lane.b32.xlu0 %v410, 7
        %v615 = vpop.permute.xlu0 %614
        %vm616 = vcmp.lt.s32.totalorder %v428, 7
        %v617 = vsel %vm616, %v613, %v615
        %v618 = vsel %vm616, %v615, %v613
        %v619 = vlaneseq
        %v620 = vshrl.u32 %v619, 7
        %v621 = vsub.s32 3, %v620
        %v622 = vrot.slane %v417, %v621
        %v623 = vlaneseq
        %v624 = vshrl.u32 %v623, 7
        %v625 = vsub.s32 3, %v624
        %v626 = vrot.slane %v418, %v625
        %v627 = vmul.f32 %v618, %v622
        %v628 = vmul.f32 %v617, %v626
        %629 = vrot.lane.b32.xlu0 %v409, 1
        %v630 = vpop.permute.xlu0 %629
        %631 = vrot.lane.b32.xlu0 %v410, 1
        %v632 = vpop.permute.xlu0 %631
        %vm633 = vcmp.lt.s32.totalorder %v428, 1
        %v634 = vsel %vm633, %v630, %v632
        %v635 = vsel %vm633, %v632, %v630
        %v636 = vlaneseq
        %v637 = vshrl.u32 %v636, 7
        %v638 = vsub.s32 4, %v637
        %v639 = vrot.slane %v417, %v638
        %v640 = vlaneseq
        %v641 = vshrl.u32 %v640, 7
        %v642 = vsub.s32 4, %v641
        %v643 = vrot.slane %v418, %v642
        %v644 = vmul.f32 %v635, %v639
        %v645 = vmul.f32 %v634, %v643
        %v646 = vlaneseq
        %v647 = vshrl.u32 %v646, 7
        %v648 = vsub.s32 5, %v647
        %v649 = vrot.slane %v417, %v648
        %v650 = vlaneseq
        %v651 = vshrl.u32 %v650, 7
        %v652 = vsub.s32 5, %v651
        %v653 = vrot.slane %v418, %v652
        %v654 = vmul.f32 %v409, %v649
        %v655 = vmul.f32 %v410, %v653
        %656 = vrot.lane.b32.xlu0 %v409, 127
        %v657 = vpop.permute.xlu0 %656
        %658 = vrot.lane.b32.xlu0 %v410, 127
        %v659 = vpop.permute.xlu0 %658
        %vm660 = vcmp.lt.s32.totalorder %v428, 127
        %v661 = vsel %vm660, %v657, %v659
        %v662 = vsel %vm660, %v659, %v657
        %v663 = vlaneseq
        %v664 = vshrl.u32 %v663, 7
        %v665 = vsub.s32 6, %v664
        %v666 = vrot.slane %v417, %v665
        %v667 = vlaneseq
        %v668 = vshrl.u32 %v667, 7
        %v669 = vsub.s32 6, %v668
        %v670 = vrot.slane %v418, %v669
        %v671 = vmul.f32 %v661, %v666
        %v672 = vmul.f32 %v662, %v670
        %673 = vrot.lane.b32.xlu0 %v409, 121
        %v674 = vpop.permute.xlu0 %673
        %675 = vrot.lane.b32.xlu0 %v410, 121
        %v676 = vpop.permute.xlu0 %675
        %vm677 = vcmp.lt.s32.totalorder %v428, 121
        %v678 = vsel %vm677, %v674, %v676
        %v679 = vsel %vm677, %v676, %v674
        %v680 = vlaneseq
        %v681 = vshrl.u32 %v680, 7
        %v682 = vsub.s32 7, %v681
        %v683 = vrot.slane %v417, %v682
        %v684 = vlaneseq
        %v685 = vshrl.u32 %v684, 7
        %v686 = vsub.s32 7, %v685
        %v687 = vrot.slane %v418, %v686
        %v688 = vmul.f32 %v678, %v683
        %v689 = vmul.f32 %v679, %v687
        %690 = vrot.lane.b32.xlu0 %v409, 120
        %v691 = vpop.permute.xlu0 %690
        %692 = vrot.lane.b32.xlu0 %v410, 120
        %v693 = vpop.permute.xlu0 %692
        %vm694 = vcmp.lt.s32.totalorder %v428, 120
        %v695 = vsel %vm694, %v691, %v693
        %v696 = vsel %vm694, %v693, %v691
        %v697 = vlaneseq
        %v698 = vshrl.u32 %v697, 7
        %v699 = vsub.s32 0, %v698
        %v700 = vrot.slane %v419, %v699
        %v701 = vlaneseq
        %v702 = vshrl.u32 %v701, 7
        %v703 = vsub.s32 0, %v702
        %v704 = vrot.slane %v420, %v703
        %v705 = vmul.f32 %v695, %v700
        %v706 = vmul.f32 %v696, %v704
        %707 = vrot.lane.b32.xlu0 %v409, 119
        %v708 = vpop.permute.xlu0 %707
        %709 = vrot.lane.b32.xlu0 %v410, 119
        %v710 = vpop.permute.xlu0 %709
        %vm711 = vcmp.lt.s32.totalorder %v428, 119
        %v712 = vsel %vm711, %v708, %v710
        %v713 = vsel %vm711, %v710, %v708
        %v714 = vlaneseq
        %v715 = vshrl.u32 %v714, 7
        %v716 = vsub.s32 1, %v715
        %v717 = vrot.slane %v419, %v716
        %v718 = vlaneseq
        %v719 = vshrl.u32 %v718, 7
        %v720 = vsub.s32 1, %v719
        %v721 = vrot.slane %v420, %v720
        %v722 = vmul.f32 %v712, %v717
        %v723 = vmul.f32 %v713, %v721
        %v724 = vlaneseq
        %v725 = vshrl.u32 %v724, 7
        %v726 = vsub.s32 2, %v725
        %v727 = vrot.slane %v419, %v726
        %v728 = vlaneseq
        %v729 = vshrl.u32 %v728, 7
        %v730 = vsub.s32 2, %v729
        %v731 = vrot.slane %v420, %v730
        %v732 = vmul.f32 %v430, %v727
        %v733 = vmul.f32 %v431, %v731
        %v734 = vlaneseq
        %v735 = vshrl.u32 %v734, 7
        %v736 = vsub.s32 3, %v735
        %v737 = vrot.slane %v419, %v736
        %v738 = vlaneseq
        %v739 = vshrl.u32 %v738, 7
        %v740 = vsub.s32 3, %v739
        %v741 = vrot.slane %v420, %v740
        %v742 = vmul.f32 %v447, %v737
        %v743 = vmul.f32 %v448, %v741
        %v744 = vlaneseq
        %v745 = vshrl.u32 %v744, 7
        %v746 = vsub.s32 4, %v745
        %v747 = vrot.slane %v419, %v746
        %v748 = vlaneseq
        %v749 = vshrl.u32 %v748, 7
        %v750 = vsub.s32 4, %v749
        %v751 = vrot.slane %v420, %v750
        %v752 = vmul.f32 %v464, %v747
        %v753 = vmul.f32 %v465, %v751
        %v754 = vlaneseq
        %v755 = vshrl.u32 %v754, 7
        %v756 = vsub.s32 5, %v755
        %v757 = vrot.slane %v419, %v756
        %v758 = vlaneseq
        %v759 = vshrl.u32 %v758, 7
        %v760 = vsub.s32 5, %v759
        %v761 = vrot.slane %v420, %v760
        %v762 = vmul.f32 %v481, %v757
        %v763 = vmul.f32 %v482, %v761
        %v764 = vlaneseq
        %v765 = vshrl.u32 %v764, 7
        %v766 = vsub.s32 6, %v765
        %v767 = vrot.slane %v419, %v766
        %v768 = vlaneseq
        %v769 = vshrl.u32 %v768, 7
        %v770 = vsub.s32 6, %v769
        %v771 = vrot.slane %v420, %v770
        %v772 = vmul.f32 %v498, %v767
        %v773 = vmul.f32 %v499, %v771
        %v774 = vlaneseq
        %v775 = vshrl.u32 %v774, 7
        %v776 = vsub.s32 7, %v775
        %v777 = vrot.slane %v419, %v776
        %v778 = vlaneseq
        %v779 = vshrl.u32 %v778, 7
        %v780 = vsub.s32 7, %v779
        %v781 = vrot.slane %v420, %v780
        %v782 = vmul.f32 %v515, %v777
        %v783 = vmul.f32 %v516, %v781
        %v784 = vlaneseq
        %v785 = vshrl.u32 %v784, 7
        %v786 = vsub.s32 0, %v785
        %v787 = vrot.slane %v421, %v786
        %v788 = vlaneseq
        %v789 = vshrl.u32 %v788, 7
        %v790 = vsub.s32 0, %v789
        %v791 = vrot.slane %v422, %v790
        %v792 = vmul.f32 %v532, %v787
        %v793 = vmul.f32 %v533, %v791
        %v794 = vlaneseq
        %v795 = vshrl.u32 %v794, 7
        %v796 = vsub.s32 1, %v795
        %v797 = vrot.slane %v421, %v796
        %v798 = vlaneseq
        %v799 = vshrl.u32 %v798, 7
        %v800 = vsub.s32 1, %v799
        %v801 = vrot.slane %v422, %v800
        %v802 = vmul.f32 %v549, %v797
        %v803 = vmul.f32 %v550, %v801
        %v804 = vlaneseq
        %v805 = vshrl.u32 %v804, 7
        %v806 = vsub.s32 2, %v805
        %v807 = vrot.slane %v421, %v806
        %v808 = vlaneseq
        %v809 = vshrl.u32 %v808, 7
        %v810 = vsub.s32 2, %v809
        %v811 = vrot.slane %v422, %v810
        %v812 = vmul.f32 %v566, %v807
        %v813 = vmul.f32 %v567, %v811
        %v814 = vpack.c.bf16 %v457, %v440
        %v815 = vpack.c.bf16 %v458, %v441
        %v816 = vpack.c.bf16 %v491, %v474
        %v817 = vpack.c.bf16 %v492, %v475
        %v818 = vpack.c.bf16 %v525, %v508
        %v819 = vpack.c.bf16 %v526, %v509
        %v820 = vpack.c.bf16 %v559, %v542
        %v821 = vpack.c.bf16 %v560, %v543
        %v822 = vpack.c.bf16 %v593, %v576
        %v823 = vpack.c.bf16 %v594, %v577
        %v824 = vpack.c.bf16 %v627, %v610
        %v825 = vpack.c.bf16 %v628, %v611
        %v826 = vpack.c.bf16 %v654, %v644
        %v827 = vpack.c.bf16 %v655, %v645
        %v828 = vpack.c.bf16 %v688, %v671
        %v829 = vpack.c.bf16 %v689, %v672
        %v830 = vpack.c.bf16 %v722, %v705
        %v831 = vpack.c.bf16 %v723, %v706
        %v832 = vpack.c.bf16 %v742, %v732
        %v833 = vpack.c.bf16 %v743, %v733
        %v834 = vpack.c.bf16 %v762, %v752
        %v835 = vpack.c.bf16 %v763, %v753
        %v836 = vpack.c.bf16 %v782, %v772
        %v837 = vpack.c.bf16 %v783, %v773
        %v838 = vpack.c.bf16 %v802, %v792
        %v839 = vpack.c.bf16 %v803, %v793
        %v840 = vpack.c.bf16 %v812, %v812
        %v841 = vpack.c.bf16 %v813, %v813
        %v842 = vld [vmem:[%s3] sm:$0xff]
        %v843 = vld [vmem:[%s4] sm:$0xff]
        %845 = vset.pattern.permute.xlu0 0
        %846 = vperm.xlu0 %845, %v843
        %v847 = vpop.permute.xlu0 %846
        %v850 = vunpack.c.l.b16 %v842
        %v851 = vunpack.c.h.b16 %v842
        %v852 = vpack.c.b16 %v850, %v850
        %v853 = vpack.c.b16 %v851, %v851
        %vm855 = vcmask 719872
        %v857 = vsel %vm855, %v853, 0
        %vm859 = vcmask 1043456
        %v861 = vsel %vm859, %v840, 0
        %v864 = vsel %vm859, %v841, 0
        %866 = vmatprep.subr.bf16.mxu0 %v829
        %867 = vmatpush1.bf16.msra.mxu0 %v828
        %868 = vmatprep.subr.bf16.mxu0 %v827
        %869 = vmatpush1.bf16.msra.mxu0 %v826
        %870 = vmatprep.subr.bf16.mxu0 %v825
        %871 = vmatpush1.bf16.msra.mxu0 %v824
        %872 = vmatprep.subr.bf16.mxu0 %v823
        %873 = vmatpush1.bf16.msra.mxu0 %v822
        %874 = vmatprep.subr.bf16.mxu0 %v821
        %875 = vmatpush1.bf16.msra.mxu0 %v820
        %876 = vmatprep.subr.bf16.mxu0 %v819
        %877 = vmatpush1.bf16.msra.mxu0 %v818
        %878 = vmatprep.subr.bf16.mxu0 %v817
        %879 = vmatpush1.bf16.msra.mxu0 %v816
        %880 = vmatprep.subr.bf16.mxu0 %v815
        %881 = vmatpush1.bf16.msra.mxu0 %v814
        %882 = vmatprep.subr.bf16.mxu0 0
        %883 = vmatpush2.bf16.msra.mxu0 0
        %884 = vmatprep.subr.bf16.mxu0 0
        %885 = vmatpush2.bf16.msra.mxu0 0
        %886 = vmatprep.subr.bf16.mxu0 %v864
        %887 = vmatpush2.bf16.msra.mxu0 %v861
        %888 = vmatprep.subr.bf16.mxu0 %v839
        %889 = vmatpush2.bf16.msra.mxu0 %v838
        %890 = vmatprep.subr.bf16.mxu0 %v837
        %891 = vmatpush2.bf16.msra.mxu0 %v836
        %892 = vmatprep.subr.bf16.mxu0 %v835
        %893 = vmatpush2.bf16.msra.mxu0 %v834
        %894 = vmatprep.subr.bf16.mxu0 %v833
        %895 = vmatpush2.bf16.msra.mxu0 %v832
        %896 = vmatprep.subr.bf16.mxu0 %v831
        %897 = vmatpush2.bf16.msra.mxu0 %v830
        %898 = vmatprep.mubr.bf16.mxu0 %v857
        %899 = vmatmul.mubr.bf16.gmra.mxu0 %v852
        %v900 = vpop.f32.mrf.mxu0
        %v901 = vadd.f32 %v847, %v900
        %v902 = vpop.f32.mrf.mxu0
        %v903 = vadd.f32 %v847, %v902
        %v904 = vpop.f32.mrf.mxu0
        %v905 = vpop.f32.mrf.mxu0
        %906 = vdwg.mxu0
        %v907 = vmax.f32 %v901, 0.0
        %v908 = vmax.f32 %v903, 0.0
        %v909 = vpack.c.bf16 %v907, %v907
        %v910 = vpack.c.bf16 %v908, %v908
        %v911 = vld [vmem:[%s5] sm:$0xf]
        %v912 = vld [vmem:[%s5 + $0x4] sm:$0xf]
        %v913 = vld [vmem:[%s5 + $0x8] sm:$0xf]
        %v914 = vld [vmem:[%s5 + $0xc] sm:$0xf]
        %v915 = vld [vmem:[%s6] sm:$0xff]
        %v916 = vld [vmem:[%s6 + $0x8] sm:$0xff]
        %v917 = vld [vmem:[%s6 + $0x10] sm:$0xff]
        %v918 = vld [vmem:[%s6 + $0x18] sm:$0xff]
        %920 = vset.pattern.permute.xlu0 0
        %921 = vperm.xlu0 %920, %v915
        %v922 = vpop.permute.xlu0 %921
        %925 = vset.pattern.permute.xlu0 0
        %926 = vperm.xlu0 %925, %v916
        %v927 = vpop.permute.xlu0 %926
        %930 = vset.pattern.permute.xlu0 0
        %931 = vperm.xlu0 %930, %v917
        %v932 = vpop.permute.xlu0 %931
        %935 = vset.pattern.permute.xlu0 0
        %936 = vperm.xlu0 %935, %v918
        %v937 = vpop.permute.xlu0 %936
        %v943 = vunpack.c.l.b16 %v911
        %v944 = vunpack.c.l.b16 %v912
        %v945 = vunpack.c.l.b16 %v913
        %v946 = vunpack.c.l.b16 %v914
        %v947 = vpack.c.b16 %v944, %v943
        %v948 = vpack.c.b16 %v946, %v945
        %vm949 = vcmask 64512
        %v951 = vsel %vm949, %v947, 0
        %v954 = vsel %vm949, %v948, 0
        %v957 = vsel %vm859, %v909, 0
        %v960 = vsel %vm859, %v910, 0
        %962 = vmatprep.subr.bf16.mxu0 0
        %963 = vmatpush1.bf16.msra.mxu0 0
        %964 = vmatprep.subr.bf16.mxu0 0
        %965 = vmatpush1.bf16.msra.mxu0 0
        %966 = vmatprep.subr.bf16.mxu0 0
        %967 = vmatpush1.bf16.msra.mxu0 0
        %968 = vmatprep.subr.bf16.mxu0 0
        %969 = vmatpush1.bf16.msra.mxu0 0
        %970 = vmatprep.subr.bf16.mxu0 0
        %971 = vmatpush1.bf16.msra.mxu0 0
        %972 = vmatprep.subr.bf16.mxu0 0
        %973 = vmatpush1.bf16.msra.mxu0 0
        %974 = vmatprep.subr.bf16.mxu0 0
        %975 = vmatpush1.bf16.msra.mxu0 0
        %976 = vmatprep.subr.bf16.mxu0 %v960
        %977 = vmatpush1.bf16.msra.mxu0 %v957
        %978 = vmatprep.subr.bf16.mxu0 0
        %979 = vmatpush2.bf16.msra.mxu0 0
        %980 = vmatprep.subr.bf16.mxu0 0
        %981 = vmatpush2.bf16.msra.mxu0 0
        %982 = vmatprep.subr.bf16.mxu0 0
        %983 = vmatpush2.bf16.msra.mxu0 0
        %984 = vmatprep.subr.bf16.mxu0 0
        %985 = vmatpush2.bf16.msra.mxu0 0
        %986 = vmatprep.subr.bf16.mxu0 0
        %987 = vmatpush2.bf16.msra.mxu0 0
        %988 = vmatprep.subr.bf16.mxu0 0
        %989 = vmatpush2.bf16.msra.mxu0 0
        %990 = vmatprep.subr.bf16.mxu0 0
        %991 = vmatpush2.bf16.msra.mxu0 0
        %992 = vmatprep.subr.bf16.mxu0 0
        %993 = vmatpush2.bf16.msra.mxu0 0
        %994 = vmatprep.mubr.bf16.mxu0 0
        %995 = vmatmul.mubr.bf16.gmra.mxu0 %v951
        %v996 = vpop.f32.mrf.mxu0
        %v997 = vadd.f32 %v922, %v996
        %v998 = vpop.f32.mrf.mxu0
        %v999 = vadd.f32 %v922, %v998
        %v1000 = vpop.f32.mrf.mxu0
        %v1001 = vadd.f32 %v927, %v1000
        %v1002 = vpop.f32.mrf.mxu0
        %v1003 = vadd.f32 %v927, %v1002
        %1004 = vmatprep.mubr.bf16.mxu0 0
        %1005 = vmatmul.mubr.bf16.gmra.mxu0 %v954
        %v1006 = vpop.f32.mrf.mxu0
        %v1007 = vadd.f32 %v932, %v1006
        %v1008 = vpop.f32.mrf.mxu0
        %v1009 = vadd.f32 %v932, %v1008
        %v1010 = vpop.f32.mrf.mxu0
        %v1011 = vadd.f32 %v937, %v1010
        %v1012 = vpop.f32.mrf.mxu0
        %v1013 = vadd.f32 %v937, %v1012
        %1014 = vdwg.mxu0
        %v1015 = vunpack.c.l.bf16 %v333
        %v1016 = vunpack.c.h.bf16 %v333
        %v1017 = vunpack.c.l.bf16 %v334
        %v1018 = vunpack.c.h.bf16 %v334
        %v1019 = vunpack.c.l.bf16 %v335
        %v1020 = vunpack.c.h.bf16 %v335
        %v1021 = vunpack.c.l.bf16 %v336
        %v1022 = vunpack.c.h.bf16 %v336
        %v1023 = vadd.f32 %v997, %v1015
        %v1024 = vadd.f32 %v999, %v1016
        %v1025 = vadd.f32 %v1001, %v1017
        %v1026 = vadd.f32 %v1003, %v1018
        %v1027 = vadd.f32 %v1007, %v1019
        %v1028 = vadd.f32 %v1009, %v1020
        %v1029 = vadd.f32 %v1011, %v1021
        %v1030 = vadd.f32 %v1013, %v1022
        %v1031 = vmax.f32 %v1023, 0.0
        %v1032 = vmax.f32 %v1024, 0.0
        %v1033 = vmax.f32 %v1025, 0.0
        %v1034 = vmax.f32 %v1026, 0.0
        %v1035 = vmax.f32 %v1027, 0.0
        %v1036 = vmax.f32 %v1028, 0.0
        %v1037 = vmax.f32 %v1029, 0.0
        %v1038 = vmax.f32 %v1030, 0.0
        %1039 = vst [vmem:[%s326] sm:$0xff] %v1031
        %1040 = vst [vmem:[%s326 + $0x8] sm:$0xff] %v1032
        %1041 = vst [vmem:[%s326 + $0x10] sm:$0xff] %v1033
        %1042 = vst [vmem:[%s326 + $0x18] sm:$0xff] %v1034
        %1043 = vst [vmem:[%s326 + $0x20] sm:$0xff] %v1035
        %1044 = vst [vmem:[%s326 + $0x28] sm:$0xff] %v1036
        %1045 = vst [vmem:[%s326 + $0x30] sm:$0xff] %v1037
        %1046 = vst [vmem:[%s326 + $0x38] sm:$0xff] %v1038
        %s1047 = sand.u32 %s205, 1
        %s1048 = scalar_lea.sflag [#allocation4], %s1047
        %s1049 = sand.u32 %s205, 1
        %s1050 = smul.addr %s1049, 64
        %s1051 = scalar_lea.vmem [#allocation7], %s1050
        // Predicated region
        $region61: #{tpu_custom_call.1} parent=51 // pred_check
          %p1052 = pneg %p215
        $region62: #{tpu_custom_call.1} parent=51 // pred_check_branch
          %1054 = sbr.rel (%p1052) target = $region64
        $region63: #{tpu_custom_call.1} parent=51 // pred_region
          %s1056 = ssub.s32 1024, 1024
          %1057 = vsyncadd %s1048, %s1056
          %s1058 = smul.addr %s24, 8
          %s1059 = smul.addr %s1058, 128
          %s1060 = scalar_lea.hbm %s8, %s1059
          %s1061 = sshll.u32 %s1051, 4
          %s1062 = int_to_ptr.vmem [resolvable:$true] %s1061
          %1067 = dma.vmem_to_hbm [thread:$0]  %s1062, 1024, %s1060, %s1048, 256, 256, 16
        $region64: #{tpu_custom_call.1} parent=51 // pred_fallthru
          _
      $region52: #{tpu_custom_call.1} parent=5 // pred_fallthru
        _
      %p1068 = scmp.le.s32.totalorder 2, %s19
      // Predicated region
      $region65: #{tpu_custom_call.1} parent=5 // pred_check
        %p1069 = pneg %p1068
      $region66: #{tpu_custom_call.1} parent=5 // pred_check_branch
        %1071 = sbr.rel (%p1069) target = $region68
      $region67: #{tpu_custom_call.1} parent=5 // pred_region
        %s1072 = ssub.s32 %s19, 2
        // Predicated region
        $region69: #{tpu_custom_call.1} parent=67 // pred_check
          %p1073 = pneg %p221
        $region70: #{tpu_custom_call.1} parent=67 // pred_check_branch
          %1075 = sbr.rel (%p1073) target = $region72
        $region71: #{tpu_custom_call.1} parent=67 // pred_region
          %s1076 = sand.u32 %s206, 1
          %s1077 = scalar_lea.sflag [#allocation4], %s1076
          %s1078 = sand.u32 %s206, 1
          %s1079 = smul.addr %s1078, 64
          %s1080 = scalar_lea.vmem [#allocation7], %s1079
          %1081 = dma.done %s1077, 1024
        $region72: #{tpu_custom_call.1} parent=67 // pred_fallthru
          _
      $region68: #{tpu_custom_call.1} parent=5 // pred_fallthru
        _
    $region6: #{tpu_custom_call.1} parent=1 // loop_footer
      %s23 = sadd.s32 1, %s19
    $region7: #{tpu_custom_call.1} parent=1 // loop_footer_branch
      %18 = sbr.rel target = $region3
    $region8: #{tpu_custom_call.1} parent=1 // loop_exit
      _
    %1082 = vsyncpa [#allocation3], 1
    %s1083 = scalar_lea.sflag [#allocation3], 1
    %1084 = vsyncpa %s1083, 1
    %1085 = vsyncpa [#allocation6], 1
    %1086 = vsyncpa [#allocation4], 1
    %s1087 = scalar_lea.sflag [#allocation4], 1
    %1088 = vsyncpa %s1087, 1

</llo_original>
